<compile_context>
chip_gen: v6e
topology: v6e:2x2x1
jax: 0.10.0
libtpu: 0.0.40
codegen_flags: <defaults>
</compile_context>

<pallas_src>
import functools
import math

import jax
import jax.numpy as jnp
from jax.experimental import pallas as pl
from jax.experimental.pallas import tpu as pltpu

GAMMA_NEG = 4   # integer: lowered as two explicit multiplies below
GAMMA_POS = 1   # integer: power of 1 dropped entirely
CLIP = 0.05

_LANES = 128
_NUM_CORES = 2  # leading "parallel" grid axis; sharded across TCs on v7x


def _round_up(a, b):
    return -(-a // b) * b


def _afl_kernel(x_ref, t_ref, o_ref, acc_ref, *, total_elems, masked):
    """Asymmetric focal loss tile: elementwise loss + running VMEM accumulator."""
    c = pl.program_id(0)          # core-split axis ("parallel")
    i = pl.program_id(1)          # streaming axis ("arbitrary")

    @pl.when(i == 0)
    def _():
        acc_ref[...] = jnp.zeros_like(acc_ref)

    x = x_ref[...].astype(jnp.float32)
    t = t_ref[...].astype(jnp.float32)

    # Stable log-sigmoid identities (EUP: exp, log):
    #   a          = exp(-|x|)
    #   log(p)     = min(x, 0)  - log(1 + a)
    #   log(1 - p) = min(-x, 0) - log(1 + a)
    a = jnp.exp(-jnp.abs(x))
    log1p_a = jnp.log(1.0 + a)
    log_p = jnp.minimum(x, 0.0) - log1p_a
    log_1mp = jnp.minimum(-x, 0.0) - log1p_a

    # PyTorch: probs = clamp(sigmoid(x), CLIP, 1-CLIP).  log is monotone, so
    # clamping the logs to [log(CLIP), log(1-CLIP)] is exactly equivalent, and
    # exp() of the clamped logs recovers the clamped probabilities (EUP slot,
    # which has slack, instead of reciprocal/where/clip on the binding VALU).
    log_lo = jnp.float32(math.log(CLIP))
    log_hi = jnp.float32(math.log(1.0 - CLIP))
    log_p_c = jnp.clip(log_p, log_lo, log_hi)
    log_1mp_c = jnp.clip(log_1mp, log_lo, log_hi)

    p = jnp.exp(log_p_c)       # clamp(sigmoid(x), CLIP, 1-CLIP)
    q = jnp.exp(log_1mp_c)     # clamp(1 - sigmoid(x), CLIP, 1-CLIP) == 1 - p

    # gamma_pos == 1 -> (1-p)**1 == q ; gamma_neg == 4 -> two explicit muls.
    p2 = p * p
    p4 = p2 * p2
    loss = -(q * t * log_p_c + p4 * (1.0 - t) * log_1mp_c)

    if masked:
        # Padding only ever lives in the very last block; mask there only.
        last_block = jnp.logical_and(c == pl.num_programs(0) - 1,
                                     i == pl.num_programs(1) - 1)
        full_rows = total_elems // _LANES      # python ints (static)
        rem = total_elems % _LANES
        tile_rows = loss.shape[0]

        @pl.when(last_block)
        def _():
            row0 = (c * pl.num_programs(1) + i) * tile_rows
            grow = row0 + jax.lax.broadcasted_iota(jnp.int32, loss.shape, 0)
            col = jax.lax.broadcasted_iota(jnp.int32, loss.shape, 1)
            valid = jnp.logical_or(
                grow < full_rows,
                jnp.logical_and(grow == full_rows, col < rem))
            acc_ref[...] += jnp.where(valid, loss, 0.0)

        @pl.when(jnp.logical_not(last_block))
        def _():
            acc_ref[...] += loss
    else:
        acc_ref[...] += loss

    @pl.when(i == pl.num_programs(1) - 1)
    def _():
        # Single cross-lane reduce per core; partial sums combined in JAX.
        o_ref[0] = jnp.sum(acc_ref[...], keepdims=True)


def _afl_pallas(x2d, t2d, *, tile_rows, grid, total_elems, masked):
    steps = grid[1]
    kernel = functools.partial(_afl_kernel, total_elems=total_elems, masked=masked)
    # TODO(synk): if DMA becomes exposed on v7x after the VALU trims, bump the
    # input BlockSpecs to pipeline_mode=pl.Buffered(3).
    return pl.pallas_call(
        kernel,
        out_shape=jax.ShapeDtypeStruct((grid[0], 1, 1), jnp.float32),
        grid_spec=pltpu.PrefetchScalarGridSpec(
            num_scalar_prefetch=0,
            grid=grid,
            in_specs=[
                pl.BlockSpec((tile_rows, _LANES), lambda c, i: (c * steps + i, 0)),
                pl.BlockSpec((tile_rows, _LANES), lambda c, i: (c * steps + i, 0)),
            ],
            out_specs=pl.BlockSpec((1, 1, 1), lambda c, i: (c, 0, 0)),
            scratch_shapes=[pltpu.VMEM((tile_rows, _LANES), jnp.float32)],
        ),
        compiler_params=pltpu.CompilerParams(
            dimension_semantics=("parallel", "arbitrary"),
            vmem_limit_bytes=40 * 1024 * 1024,
        ),
    )(x2d, t2d)


def _tail_loss_sum(x, t):
    """Plain-JAX loss sum for the small unaligned tail (avoids jnp.pad copy)."""
    x = x.astype(jnp.float32)
    t = t.astype(jnp.float32)
    probs = jnp.clip(jax.nn.sigmoid(x), CLIP, 1.0 - CLIP)
    pos_w = (1.0 - probs) * t                      # gamma_pos == 1
    neg_w = (probs * probs) * (probs * probs) * (1.0 - t)   # gamma_neg == 4
    loss = -(pos_w * jnp.log(probs) + neg_w * jnp.log(1.0 - probs))
    return jnp.sum(loss)


def asymmetric_focal_loss(inputs, targets, *, max_tile_rows=8192):
    """Scalar mean asymmetric focal loss (matches the PyTorch module forward)."""
    assert inputs.shape == targets.shape

    n = math.prod(inputs.shape)
    x = inputs.reshape(-1)
    t = targets.reshape(-1)

    max_tile_rows = max(8, (max_tile_rows // 8) * 8)
    rows_all = -(-n // _LANES)                              # ceil(n / 128)
    tile_rows = min(max_tile_rows, _round_up(rows_all, 8))  # multiple of 8 sublanes
    chunk = tile_rows * _LANES                              # elems per grid step

    steps_per_core = (n // chunk) // _NUM_CORES

    if steps_per_core >= 1:
        # Main path: pad-free streaming over the tile-aligned prefix, split
        # across the two TensorCores; small tail handled in plain JAX.
        n_main = steps_per_core * _NUM_CORES * chunk
        main_rows = n_main // _LANES
        partials = _afl_pallas(
            x[:n_main].reshape(main_rows, _LANES),
            t[:n_main].reshape(main_rows, _LANES),
            tile_rows=tile_rows,
            grid=(_NUM_CORES, steps_per_core),
            total_elems=n_main,
            masked=False,
        )
        total = jnp.sum(partials)
        if n_main < n:
            total = total + _tail_loss_sum(x[n_main:], t[n_main:])
    else:
        # Small input: a single block; padding a block this size is cheap.
        pad = chunk - n
        if pad:
            x = jnp.pad(x, (0, pad))
            t = jnp.pad(t, (0, pad))
        partials = _afl_pallas(
            x.reshape(tile_rows, _LANES),
            t.reshape(tile_rows, _LANES),
            tile_rows=tile_rows,
            grid=(1, 1),
            total_elems=n,
            masked=pad > 0,
        )
        total = jnp.sum(partials)

    return total / jnp.float32(n)


def _reference(inputs, targets):
    probs = jax.nn.sigmoid(inputs.astype(jnp.float32))
    probs = jnp.clip(probs, CLIP, 1.0 - CLIP)
    t = targets.astype(jnp.float32)
    pos_w = (1.0 - probs) ** GAMMA_POS * t
    neg_w = probs ** GAMMA_NEG * (1.0 - t)
    loss = -(pos_w * jnp.log(probs) + neg_w * jnp.log(1.0 - probs))
    return loss.mean()


if __name__ == "__main__":
    key = jax.random.PRNGKey(0)
    k1, k2, k3, k4, k5, k6 = jax.random.split(key, 6)

    # Case 1: tile-aligned small shape (16 examples x 128 tags).
    B, C = 16, 128
    inputs = jax.random.normal(k1, (B, C), dtype=jnp.float32)
    targets = (jax.random.uniform(k2, (B, C)) > 0.9).astype(jnp.float32)
    loss = asymmetric_focal_loss(inputs, targets)
    jax.block_until_ready(loss)
    ref = _reference(inputs, targets)
    assert jnp.allclose(loss, ref, rtol=1e-4, atol=1e-6), (loss, ref)

    # Case 2: awkward shape (exercises the masked last-block path).
    B2, C2 = 7, 90
    inputs2 = jax.random.normal(k3, (B2, C2), dtype=jnp.float32)
    targets2 = (jax.random.uniform(k4, (B2, C2)) > 0.9).astype(jnp.float32)
    loss2 = asymmetric_focal_loss(inputs2, targets2)
    jax.block_until_ready(loss2)
    ref2 = _reference(inputs2, targets2)
    assert jnp.allclose(loss2, ref2, rtol=1e-4, atol=1e-6), (loss2, ref2)

    # Case 3: forces the dual-core streaming path + plain-JAX tail
    # (small tile size so the main grid is (2, 2) even at a tiny shape).
    B3, C3 = 40, 128
    inputs3 = jax.random.normal(k5, (B3, C3), dtype=jnp.float32)
    targets3 = (jax.random.uniform(k6, (B3, C3)) > 0.9).astype(jnp.float32)
    loss3 = asymmetric_focal_loss(inputs3, targets3, max_tile_rows=8)
    jax.block_until_ready(loss3)
    ref3 = _reference(inputs3, targets3)
    assert jnp.allclose(loss3, ref3, rtol=1e-4, atol=1e-6), (loss3, ref3)

    print("KERNEL_OK")
</pallas_src>

<mosaic_0001>
module attributes {stable_mosaic.version = 11 : i64} {
  func.func @_afl_kernel(%arg0: i32, %arg1: i32, %arg2: memref<16x128xf32, #tpu.memory_space<vmem>>, %arg3: memref<16x128xf32, #tpu.memory_space<vmem>>, %arg4: memref<1x1x1xf32, #tpu.memory_space<vmem>>, %arg5: memref<16x128xf32, #tpu.memory_space<vmem>>) attributes {dimension_semantics = [#tpu.dimension_semantics<parallel>, #tpu.dimension_semantics<arbitrary>], iteration_bounds = array<i64: 1, 1>, scalar_prefetch = 0 : i64, scratch_operands = 1 : i64, tpu.core_type = #tpu.core_type<tc>, window_params = [{transform_indices = @transform_0, window_bounds = array<i64: 16, 128>}, {transform_indices = @transform_1, window_bounds = array<i64: 16, 128>}, {transform_indices = @transform_2, window_bounds = array<i64: 1, 1, 1>}]} {
    %c0_i32 = arith.constant 0 : i32
    %0 = arith.cmpi eq, %arg1, %c0_i32 : i32
    %1 = arith.extui %0 : i1 to i32
    %c0_i32_0 = arith.constant 0 : i32
    %2 = arith.cmpi ne, %1, %c0_i32_0 : i32
    scf.if %2 {
      %cst_20 = arith.constant 0.000000e+00 : f32
      %47 = vector.broadcast %cst_20 : f32 to vector<16x128xf32>
      %c0_21 = arith.constant 0 : index
      %c0_22 = arith.constant 0 : index
      %48 = vector.load %arg5[%c0_21, %c0_22] : memref<16x128xf32, #tpu.memory_space<vmem>>, vector<16x128xf32>
      tpu.vector_store %arg5[%c0_21, %c0_22], %47 {strides = array<i32>} : memref<16x128xf32, #tpu.memory_space<vmem>>, vector<16x128xf32>,
    } else {
    }
    %c0 = arith.constant 0 : index
    %c0_1 = arith.constant 0 : index
    %3 = vector.load %arg2[%c0, %c0_1] : memref<16x128xf32, #tpu.memory_space<vmem>>, vector<16x128xf32>
    %c0_2 = arith.constant 0 : index
    %c0_3 = arith.constant 0 : index
    %4 = vector.load %arg3[%c0_2, %c0_3] : memref<16x128xf32, #tpu.memory_space<vmem>>, vector<16x128xf32>
    %5 = math.absf %3 : vector<16x128xf32>
    %cst = arith.constant 0.000000e+00 : f32
    %6 = vector.broadcast %cst : f32 to vector<16x128xf32>
    %7 = arith.subf %6, %5 : vector<16x128xf32>
    %8 = math.exp %7 : vector<16x128xf32>
    %cst_4 = arith.constant 1.000000e+00 : f32
    %9 = vector.broadcast %cst_4 : f32 to vector<16x128xf32>
    %10 = arith.addf %9, %8 : vector<16x128xf32>
    %11 = math.log %10 : vector<16x128xf32>
    %cst_5 = arith.constant 0.000000e+00 : f32
    %12 = vector.broadcast %cst_5 : f32 to vector<16x128xf32>
    %13 = arith.minimumf %3, %12 : vector<16x128xf32>
    %14 = arith.subf %13, %11 : vector<16x128xf32>
    %cst_6 = arith.constant 0.000000e+00 : f32
    %15 = vector.broadcast %cst_6 : f32 to vector<16x128xf32>
    %16 = arith.subf %15, %3 : vector<16x128xf32>
    %cst_7 = arith.constant 0.000000e+00 : f32
    %17 = vector.broadcast %cst_7 : f32 to vector<16x128xf32>
    %18 = arith.minimumf %16, %17 : vector<16x128xf32>
    %19 = arith.subf %18, %11 : vector<16x128xf32>
    %cst_8 = arith.constant -2.99573231 : f32
    %cst_9 = arith.constant -0.0512932949 : f32
    %20 = vector.broadcast %cst_8 : f32 to vector<16x128xf32>
    %21 = arith.maximumf %20, %14 : vector<16x128xf32>
    %22 = vector.broadcast %cst_9 : f32 to vector<16x128xf32>
    %23 = arith.minimumf %22, %21 : vector<16x128xf32>
    %cst_10 = arith.constant -2.99573231 : f32
    %cst_11 = arith.constant -0.0512932949 : f32
    %24 = vector.broadcast %cst_10 : f32 to vector<16x128xf32>
    %25 = arith.maximumf %24, %19 : vector<16x128xf32>
    %26 = vector.broadcast %cst_11 : f32 to vector<16x128xf32>
    %27 = arith.minimumf %26, %25 : vector<16x128xf32>
    %28 = math.exp %23 : vector<16x128xf32>
    %29 = math.exp %27 : vector<16x128xf32>
    %30 = arith.mulf %28, %28 : vector<16x128xf32>
    %31 = arith.mulf %30, %30 : vector<16x128xf32>
    %32 = arith.mulf %29, %4 : vector<16x128xf32>
    %33 = arith.mulf %32, %23 : vector<16x128xf32>
    %cst_12 = arith.constant 1.000000e+00 : f32
    %34 = vector.broadcast %cst_12 : f32 to vector<16x128xf32>
    %35 = arith.subf %34, %4 : vector<16x128xf32>
    %36 = arith.mulf %31, %35 : vector<16x128xf32>
    %37 = arith.mulf %36, %27 : vector<16x128xf32>
    %38 = arith.addf %33, %37 : vector<16x128xf32>
    %cst_13 = arith.constant 0.000000e+00 : f32
    %39 = vector.broadcast %cst_13 : f32 to vector<16x128xf32>
    %40 = arith.subf %39, %38 : vector<16x128xf32>
    %c0_14 = arith.constant 0 : index
    %c0_15 = arith.constant 0 : index
    %41 = vector.load %arg5[%c0_14, %c0_15] : memref<16x128xf32, #tpu.memory_space<vmem>>, vector<16x128xf32>
    %42 = arith.addf %41, %40 : vector<16x128xf32>
    %c0_16 = arith.constant 0 : index
    %c0_17 = arith.constant 0 : index
    %43 = vector.load %arg5[%c0_16, %c0_17] : memref<16x128xf32, #tpu.memory_space<vmem>>, vector<16x128xf32>
    tpu.vector_store %arg5[%c0_16, %c0_17], %42 {strides = array<i32>} : memref<16x128xf32, #tpu.memory_space<vmem>>, vector<16x128xf32>,
    %c0_i32_18 = arith.constant 0 : i32
    %44 = arith.cmpi eq, %arg1, %c0_i32_18 : i32
    %45 = arith.extui %44 : i1 to i32
    %c0_i32_19 = arith.constant 0 : i32
    %46 = arith.cmpi ne, %45, %c0_i32_19 : i32
    scf.if %46 {
      %c0_20 = arith.constant 0 : index
      %c0_21 = arith.constant 0 : index
      %47 = vector.load %arg5[%c0_20, %c0_21] : memref<16x128xf32, #tpu.memory_space<vmem>>, vector<16x128xf32>
      %48 = vector.shape_cast %47 : vector<16x128xf32> to vector<1x16x128xf32>
      %cst_22 = arith.constant dense<0.000000e+00> : vector<1xf32>
      %49 = vector.multi_reduction <add>, %48, %cst_22 [1, 2] : vector<1x16x128xf32> to vector<1xf32>
      %50 = vector.shape_cast %49 : vector<1xf32> to vector<1x1x1xf32>
      %51 = vector.extract %50[0, 0, 0] : f32 from vector<1x1x1xf32>
      %52 = vector.broadcast %51 : f32 to vector<1x1xf32>
      %c0_23 = arith.constant 0 : index
      %c0_24 = arith.constant 0 : index
      %c0_25 = arith.constant 0 : index
      %53 = vector.load %arg4[%c0_23, %c0_24, %c0_25] : memref<1x1x1xf32, #tpu.memory_space<vmem>>, vector<1x1x1xf32>
      %54 = vector.shape_cast %53 : vector<1x1x1xf32> to vector<1x1xf32>
      %55 = vector.shape_cast %52 : vector<1x1xf32> to vector<1x1x1xf32>
      tpu.vector_store %arg4[%c0_23, %c0_24, %c0_25], %55 {strides = array<i32>} : memref<1x1x1xf32, #tpu.memory_space<vmem>>, vector<1x1x1xf32>,
    } else {
    }
    return
  }
  func.func @transform_0(%arg0: i32, %arg1: i32) -> (i32, i32) {
    %c1_i32 = arith.constant 1 : i32
    %0 = arith.muli %arg0, %c1_i32 : i32
    %1 = arith.addi %0, %arg1 : i32
    %c0_i32 = arith.constant 0 : i32
    %c0_i32_0 = arith.constant 0 : i32
    return %1, %c0_i32 : i32, i32
  }
  func.func @transform_1(%arg0: i32, %arg1: i32) -> (i32, i32) {
    %c1_i32 = arith.constant 1 : i32
    %0 = arith.muli %arg0, %c1_i32 : i32
    %1 = arith.addi %0, %arg1 : i32
    %c0_i32 = arith.constant 0 : i32
    %c0_i32_0 = arith.constant 0 : i32
    return %1, %c0_i32 : i32, i32
  }
  func.func @transform_2(%arg0: i32, %arg1: i32) -> (i32, i32, i32) {
    %c0_i32 = arith.constant 0 : i32
    %c0_i32_0 = arith.constant 0 : i32
    %c0_i32_1 = arith.constant 0 : i32
    return %arg0, %c0_i32, %c0_i32_0 : i32, i32, i32
  }
}

</mosaic_0001>

<llo_original>
// kernel: tpu_custom_call.1
$region0: #{tpu_custom_call.1}
  #allocation0 [shape = 'u32[]', space=smem, size = 0x4, offset = 0x4, fixed_abs, tag = 'smem constant byte address 0x4 - core index']
  #allocation1 [shape = 'u32[144,128]{1,0:T(1,128)}', space=vmem, size = 0x12000, scoped, tag = 'internal scratch']
  #allocation2 [shape = 'f32[16,128]{1,0:T(8,128)}', space=vmem, size = 0x2000, scoped, tag = 'scratch operand']
  %s0 = inlined_call_operand.hbm [shape: f32[16,128], index: 0, kind: input, shape index: {}]
  %s1 = inlined_call_operand.hbm [shape: f32[16,128], index: 1, kind: input, shape index: {}]
  %s2 = inlined_call_operand.hbm [shape: f32[1,1,1], index: 2, kind: output, shape index: {}]
  %s3 = sld [smem:[#allocation0]]
  $region34: #{tpu_custom_call.1} parent=0
    _
  %s5 = ssub.s32 1, %s3
  %s6 = scalar_select 0, %s5, %s3
  $region1: #{tpu_custom_call.1} parent=0
    #allocation3 [shape = 'u8[8192]{0}', space=vmem, size = 0x2000, scoped, tag = 'input window, operand 0, single buffered']
    #allocation4 [shape = 's32[1]{0}', space=sflag, size = 0x4, scoped, tag = 'scoped memory for tpu_custom_call.1']
    #allocation5 [shape = 's32[1]{0}', space=sflag, size = 0x4, scoped, tag = 'scoped memory for tpu_custom_call.1']
    #allocation6 [shape = 'u8[8192]{0}', space=vmem, size = 0x2000, scoped, tag = 'input window, operand 1, single buffered']
    #allocation7 [shape = 's32[1]{0}', space=sflag, size = 0x4, scoped, tag = 'scoped memory for tpu_custom_call.1']
    #allocation8 [shape = 'u8[512]{0}', space=vmem, size = 0x400, scoped, tag = 'output window, operand 0, single buffered']
    %7 = vsyncpa [#allocation4], 0
    %8 = vsyncpa [#allocation7], 0
    %9 = vsyncpa [#allocation5], 0
    // Predicated region
    $region2: #{tpu_custom_call.1} parent=1 // pred_check
      _
    $region3: #{tpu_custom_call.1} parent=1 // pred_check_branch
      %11 = sbr.rel (0) target = $region5
    $region4: #{tpu_custom_call.1} parent=1 // pred_region
      %s12 = sadd.s32 0, 0
      %s13 = smul.u32 2, %s12
      %s15 = ssub.s32 256, 256
      %16 = vsyncadd [#allocation4], %s15
      %s17 = smul.addr %s13, 128
      %s18 = scalar_lea.hbm %s0, %s17
      %s19 = sshll.u32 [#allocation3], 4
      %s20 = int_to_ptr.vmem [resolvable:$true] %s19
      %25 = dma.hbm_to_vmem [thread:$0]  %s18, 256, %s20, [#allocation4], 128, 128, 8
    $region5: #{tpu_custom_call.1} parent=1 // pred_fallthru
      _
    // Predicated region
    $region6: #{tpu_custom_call.1} parent=1 // pred_check
      _
    $region7: #{tpu_custom_call.1} parent=1 // pred_check_branch
      %27 = sbr.rel (0) target = $region9
    $region8: #{tpu_custom_call.1} parent=1 // pred_region
      %s28 = sadd.s32 0, 0
      %s29 = smul.u32 2, %s28
      %s31 = ssub.s32 256, 256
      %32 = vsyncadd [#allocation7], %s31
      %s33 = smul.addr %s29, 128
      %s34 = scalar_lea.hbm %s1, %s33
      %s35 = sshll.u32 [#allocation6], 4
      %s36 = int_to_ptr.vmem [resolvable:$true] %s35
      %41 = dma.hbm_to_vmem [thread:$0]  %s34, 256, %s36, [#allocation7], 128, 128, 8
    $region9: #{tpu_custom_call.1} parent=1 // pred_fallthru
      _
    // Predicated region
    $region10: #{tpu_custom_call.1} parent=1 // pred_check
      _
    $region11: #{tpu_custom_call.1} parent=1 // pred_check_branch
      %43 = sbr.rel (0) target = $region13
    $region12: #{tpu_custom_call.1} parent=1 // pred_region
      %44 = dma.done [#allocation4], 256
    $region13: #{tpu_custom_call.1} parent=1 // pred_fallthru
      _
    // Predicated region
    $region14: #{tpu_custom_call.1} parent=1 // pred_check
      _
    $region15: #{tpu_custom_call.1} parent=1 // pred_check_branch
      %46 = sbr.rel (0) target = $region17
    $region16: #{tpu_custom_call.1} parent=1 // pred_region
      %47 = dma.done [#allocation7], 256
    $region17: #{tpu_custom_call.1} parent=1 // pred_fallthru
      _
    %s48 = sadd.s32 0, 0
    %s49 = smul.u32 2, %s48
    %s50 = sadd.s32 0, 0
    %s51 = smul.u32 2, %s50
    %p52 = scmp.eq.s32.totalorder 0, 0
    // Predicated region
    $region18: #{tpu_custom_call.1} parent=1 // pred_check
      %p53 = pneg %p52
    $region19: #{tpu_custom_call.1} parent=1 // pred_check_branch
      %55 = sbr.rel (%p53) target = $region21
    $region20: #{tpu_custom_call.1} parent=1 // pred_region
      %56 = vst [vmem:[#allocation2] sm:$0xff] 0.0
      %57 = vst [vmem:[#allocation2 + $0x8] sm:$0xff] 0.0
    $region21: #{tpu_custom_call.1} parent=1 // pred_fallthru
      _
    %v58 = vld [vmem:[#allocation3] sm:$0xff]
    %v59 = vld [vmem:[#allocation3 + $0x8] sm:$0xff]
    %v60 = vld [vmem:[#allocation6] sm:$0xff]
    %v61 = vld [vmem:[#allocation6 + $0x8] sm:$0xff]
    %v62 = vand.u32 2147483647, %v58
    %v63 = vand.u32 2147483647, %v59
    %v64 = vsub.f32 0.0, %v62
    %v65 = vsub.f32 0.0, %v63
    %v66 = vmul.f32 %v64, 1.442695
    %v67 = vpow.pop %v66
    %v68 = vmul.f32 %v65, 1.442695
    %v69 = vpow.pop %v68
    %v70 = vadd.f32 %v67, 1.0
    %v71 = vadd.f32 %v69, 1.0
    %v72 = vlog2.pop %v70
    %v73 = vmul.f32 %v72, 0.6931472
    %v74 = vlog2.pop %v71
    %v75 = vmul.f32 %v74, 0.6931472
    %v76 = vmin.f32 %v58, 0.0
    %v77 = vmin.f32 %v59, 0.0
    %v78 = vsub.f32 %v76, %v73
    %v79 = vsub.f32 %v77, %v75
    %v80 = vsub.f32 0.0, %v58
    %v81 = vsub.f32 0.0, %v59
    %v82 = vmin.f32 %v80, 0.0
    %v83 = vmin.f32 %v81, 0.0
    %v84 = vsub.f32 %v82, %v73
    %v85 = vsub.f32 %v83, %v75
    %v86 = vmax.f32 %v78, -2.9957323
    %v87 = vmax.f32 %v79, -2.9957323
    %v88 = vmin.f32 %v86, -0.051293295
    %v89 = vmin.f32 %v87, -0.051293295
    %v90 = vmax.f32 %v84, -2.9957323
    %v91 = vmax.f32 %v85, -2.9957323
    %v92 = vmin.f32 %v90, -0.051293295
    %v93 = vmin.f32 %v91, -0.051293295
    %v94 = vmul.f32 %v88, 1.442695
    %v95 = vpow.pop %v94
    %v96 = vmul.f32 %v89, 1.442695
    %v97 = vpow.pop %v96
    %v98 = vmul.f32 %v92, 1.442695
    %v99 = vpow.pop %v98
    %v100 = vmul.f32 %v93, 1.442695
    %v101 = vpow.pop %v100
    %v102 = vmul.f32 %v95, %v95
    %v103 = vmul.f32 %v97, %v97
    %v104 = vmul.f32 %v102, %v102
    %v105 = vmul.f32 %v103, %v103
    %v106 = vmul.f32 %v99, %v60
    %v107 = vmul.f32 %v101, %v61
    %v108 = vmul.f32 %v106, %v88
    %v109 = vmul.f32 %v107, %v89
    %v110 = vsub.f32 1.0, %v60
    %v111 = vsub.f32 1.0, %v61
    %v112 = vmul.f32 %v104, %v110
    %v113 = vmul.f32 %v105, %v111
    %v114 = vmul.f32 %v112, %v92
    %v115 = vmul.f32 %v113, %v93
    %v116 = vadd.f32 %v108, %v114
    %v117 = vadd.f32 %v109, %v115
    %v118 = vsub.f32 0.0, %v116
    %v119 = vsub.f32 0.0, %v117
    %v120 = vld [vmem:[#allocation2] sm:$0xff]
    %v121 = vld [vmem:[#allocation2 + $0x8] sm:$0xff]
    %v122 = vadd.f32 %v120, %v118
    %v123 = vadd.f32 %v121, %v119
    %124 = vst [vmem:[#allocation2] sm:$0xff] %v122
    %125 = vst [vmem:[#allocation2 + $0x8] sm:$0xff] %v123
    // Predicated region
    $region22: #{tpu_custom_call.1} parent=1 // pred_check
      %p126 = pneg %p52
    $region23: #{tpu_custom_call.1} parent=1 // pred_check_branch
      %128 = sbr.rel (%p126) target = $region25
    $region24: #{tpu_custom_call.1} parent=1 // pred_region
      %v129 = vld [vmem:[#allocation2] sm:$0xff]
      %v130 = vld [vmem:[#allocation2 + $0x8] sm:$0xff]
      %v131 = vadd.f32 %v129, %v130
      %132 = vadd.xlane.f32.xlu0 %v131
      %v133 = vpop.xlane.xlu0 %132
      %v134 = vrot.slane %v133, 4
      %v135 = vadd.f32 %v133, %v134
      %v136 = vrot.slane %v135, 2
      %v137 = vadd.f32 %v135, %v136
      %v138 = vrot.slane %v137, 1
      %v139 = vadd.f32 %v137, %v138
      %s140 = vtos %v139
      %v141 = vstv %s140
      %vm142 = vcmask 0
      %143 = vst.msk [vmem:[#allocation8] sm:$0x1] %vm142, %v141
    $region25: #{tpu_custom_call.1} parent=1 // pred_fallthru
      _
    // Predicated region
    $region26: #{tpu_custom_call.1} parent=1 // pred_check
      _
    $region27: #{tpu_custom_call.1} parent=1 // pred_check_branch
      %145 = sbr.rel (0) target = $region29
    $region28: #{tpu_custom_call.1} parent=1 // pred_region
      %s147 = ssub.s32 16, 16
      %148 = vsyncadd [#allocation5], %s147
      %s150 = sshll.u32 [#allocation8], 4
      %s151 = int_to_ptr.vmem [resolvable:$true] %s150
      %153 = dma.vmem_to_hbm [thread:$0]  %s151, 16, %s2, [#allocation5]
    $region29: #{tpu_custom_call.1} parent=1 // pred_fallthru
      _
    // Predicated region
    $region30: #{tpu_custom_call.1} parent=1 // pred_check
      _
    $region31: #{tpu_custom_call.1} parent=1 // pred_check_branch
      %155 = sbr.rel (0) target = $region33
    $region32: #{tpu_custom_call.1} parent=1 // pred_region
      %156 = dma.done [#allocation5], 16
    $region33: #{tpu_custom_call.1} parent=1 // pred_fallthru
      _
    %157 = vsyncpa [#allocation4], 1
    %158 = vsyncpa [#allocation7], 1
    %159 = vsyncpa [#allocation5], 1

</llo_original>
